<compile_context>
chip_gen: v6e
topology: v6e:2x2x1
jax: 0.10.0
libtpu: 0.0.40
codegen_flags: <defaults>
</compile_context>

<pallas_src>
import functools

import jax
import jax.numpy as jnp
from jax.experimental import pallas as pl
from jax.experimental.pallas import tpu as pltpu

EPS = 1e-6


def _sublayer_connection_kernel(seed_ref, x_ref, w_ref, b_ref, g_ref, be_ref,
                                o_ref, *, dropout_p, tile_n):
    x = x_ref[...]                                    # (TILE_N, H) f32
    h = x.shape[-1]

    # ---- LayerNorm (pre-norm, annotated-transformer flavour) -------------
    mean = jnp.mean(x, axis=-1, keepdims=True)
    xc = x - mean
    var = jnp.sum(xc * xc, axis=-1, keepdims=True) * (1.0 / (h - 1))  # unbiased
    inv = 1.0 / (jnp.sqrt(var) + EPS)                 # per-row scalar; recip-mul
    y = g_ref[...] * (xc * inv) + be_ref[...]

    # ---- sublayer: Linear(H, H) — bf16 operands on the MXU, f32 accumulate -
    s = jnp.dot(y.astype(jnp.bfloat16), w_ref[...],
                preferred_element_type=jnp.float32) + b_ref[...]

    # ---- dropout (inverted scaling; deterministic counter-based hash) -----
    if dropout_p > 0.0:
        rows = jax.lax.broadcasted_iota(jnp.int32, s.shape, 0)
        cols = jax.lax.broadcasted_iota(jnp.int32, s.shape, 1)
        # Unique id per output element across the whole (padded) activation,
        # so every grid step / tile sees a distinct mask.
        gid = (pl.program_id(0) * tile_n + rows) * h + cols
        z = gid + seed_ref[0] * jnp.int32(0x165667B1)
        z = ((z >> 16) ^ z) * jnp.int32(0x045D9F3B)
        z = ((z >> 16) ^ z) * jnp.int32(0x045D9F3B)
        z = ((z >> 16) ^ z) & jnp.int32(0x7FFFFFFF)   # ~uniform 31-bit value
        threshold = min(int(dropout_p * 2147483648.0), 2147483647)
        keep = z >= jnp.int32(threshold)
        s = jnp.where(keep, s * (1.0 / (1.0 - dropout_p)), 0.0)

    # ---- residual connection ----------------------------------------------
    o_ref[...] = x + s


def _reference_no_dropout(x, w, b, gamma, beta):
    mean = x.mean(-1, keepdims=True)
    xc = x - mean
    var = (xc * xc).sum(-1, keepdims=True) / (x.shape[-1] - 1)
    inv = 1.0 / (jnp.sqrt(var) + EPS)
    y = gamma * (xc * inv) + beta
    s = jnp.dot(y.astype(jnp.bfloat16).astype(jnp.float32),
                w.astype(jnp.bfloat16).astype(jnp.float32)) + b
    return x + s


def sublayer_connection(x, w, b, gamma, beta, *, dropout_p=0.0, seed=0,
                        tile_n=512):
    """x: (B, S, H) f32.  Returns x + dropout(linear(layernorm(x)))."""
    B, S, H = x.shape
    N = B * S
    x2 = x.reshape(N, H)

    # Row tile: multiple of 8 (sublane), capped at the padded row count.
    tile_n = max(8, min(int(tile_n), pl.cdiv(N, 8) * 8))
    tile_n = (tile_n // 8) * 8
    n_pad = pl.cdiv(N, tile_n) * tile_n
    if n_pad != N:
        x2 = jnp.pad(x2, ((0, n_pad - N), (0, 0)))     # padded rows discarded below
    n_tiles = n_pad // tile_n

    # bf16 weight: halves its HBM DMA and VMEM residency; matmul accumulates f32.
    w_bf = w.astype(jnp.bfloat16)
    # TODO(synk): for large H (e.g. 4096 on v7x's 64 MiB VMEM) add a K-axis to
    # the grid with an f32 accumulator scratch instead of keeping (H, H) resident.

    kernel = functools.partial(_sublayer_connection_kernel,
                               dropout_p=float(dropout_p), tile_n=tile_n)

    cost = pl.CostEstimate(
        flops=2 * n_pad * H * H,
        transcendentals=n_pad,                          # one sqrt per row
        bytes_accessed=2 * n_pad * H * 4 + H * H * 2 + 3 * H * 4,
    )

    # Scoped-VMEM hint: x tile + out tile double-buffered + resident weight,
    # plus headroom for the f32 matmul result / LN temporaries.
    est_vmem = 4 * (2 * tile_n * H * 4) + H * H * 2 + 6 * H * 4 + (4 << 20)
    vmem_limit = min(64 * 1024 * 1024, max(32 * 1024 * 1024, est_vmem))

    out = pl.pallas_call(
        kernel,
        out_shape=jax.ShapeDtypeStruct((n_pad, H), x.dtype),
        grid_spec=pltpu.PrefetchScalarGridSpec(
            num_scalar_prefetch=1,                      # dropout seed lands in SMEM
            grid=(n_tiles,),
            in_specs=[
                pl.BlockSpec((tile_n, H), lambda i, sref: (i, 0)),  # x tile
                pl.BlockSpec((H, H), lambda i, sref: (0, 0)),       # weight (resident)
                pl.BlockSpec((1, H), lambda i, sref: (0, 0)),       # linear bias
                pl.BlockSpec((1, H), lambda i, sref: (0, 0)),       # LN gamma (a_2)
                pl.BlockSpec((1, H), lambda i, sref: (0, 0)),       # LN beta  (b_2)
            ],
            out_specs=pl.BlockSpec((tile_n, H), lambda i, sref: (i, 0)),
        ),
        compiler_params=pltpu.CompilerParams(
            dimension_semantics=("parallel",),          # rows independent -> megacore
            vmem_limit_bytes=vmem_limit),
        cost_estimate=cost,
    )(jnp.asarray([seed], jnp.int32), x2, w_bf, b, gamma, beta)

    return out[:N].reshape(B, S, H)


if __name__ == "__main__":
    B, S, H = 2, 8, 32
    key = jax.random.PRNGKey(0)
    kx, kw = jax.random.split(key)

    x = jax.random.normal(kx, (B, S, H), dtype=jnp.float32)

    # Deterministic parameter init (LayerNorm: a_2=1, b_2=0; Linear: random W, zero bias).
    gamma = jnp.ones((1, H), jnp.float32)
    beta = jnp.zeros((1, H), jnp.float32)
    w = (jax.random.normal(kw, (H, H), dtype=jnp.float32) / jnp.sqrt(H)).astype(jnp.float32)
    b = jnp.zeros((1, H), jnp.float32)

    # Eval-mode (dropout off): correctness vs a pure-JAX reference.
    # tile_n=8 -> grid of 2 steps at this toy size, exercising the tiled path.
    out_eval = sublayer_connection(x, w, b, gamma, beta, dropout_p=0.0, tile_n=8)
    ref = _reference_no_dropout(x, w, b, gamma, beta)
    assert jnp.allclose(out_eval, ref, atol=1e-3, rtol=1e-3), "mismatch vs reference"

    # Single-tile path (default-style large tile capped to the row count).
    out_eval_1t = sublayer_connection(x, w, b, gamma, beta, dropout_p=0.0, tile_n=512)
    assert jnp.allclose(out_eval_1t, ref, atol=1e-3, rtol=1e-3), "mismatch (single tile)"

    # Training-mode with dropout p=0.1 (deterministic hash-based mask).
    out_train = sublayer_connection(x, w, b, gamma, beta, dropout_p=0.1,
                                    seed=1234, tile_n=8)
    jax.block_until_ready(out_train)
    assert bool(jnp.all(jnp.isfinite(out_train))), "non-finite output"
    assert bool(jnp.any(out_train != out_eval)), "dropout had no effect"

    print("KERNEL_OK")
</pallas_src>

<mosaic_0001>
module attributes {stable_mosaic.version = 11 : i64} {
  func.func @_sublayer_connection_kernel(%arg0: i32, %arg1: memref<1xi32, #tpu.memory_space<smem>>, %arg2: memref<8x32xf32, #tpu.memory_space<vmem>>, %arg3: memref<32x32xbf16, #tpu.memory_space<vmem>>, %arg4: memref<1x32xf32, #tpu.memory_space<vmem>>, %arg5: memref<1x32xf32, #tpu.memory_space<vmem>>, %arg6: memref<1x32xf32, #tpu.memory_space<vmem>>, %arg7: memref<8x32xf32, #tpu.memory_space<vmem>>) attributes {dimension_semantics = [#tpu.dimension_semantics<parallel>], iteration_bounds = array<i64: 2>, scalar_prefetch = 1 : i64, scratch_operands = 0 : i64, tpu.core_type = #tpu.core_type<tc>, window_params = [{transform_indices = @transform_0, window_bounds = array<i64: 8, 32>}, {pipeline_mode = #tpu.pipeline_mode<synchronous>, transform_indices = @transform_1, window_bounds = array<i64: 32, 32>}, {pipeline_mode = #tpu.pipeline_mode<synchronous>, transform_indices = @transform_2, window_bounds = array<i64: 1, 32>}, {pipeline_mode = #tpu.pipeline_mode<synchronous>, transform_indices = @transform_3, window_bounds = array<i64: 1, 32>}, {pipeline_mode = #tpu.pipeline_mode<synchronous>, transform_indices = @transform_4, window_bounds = array<i64: 1, 32>}, {transform_indices = @transform_5, window_bounds = array<i64: 8, 32>}]} {
    %c0 = arith.constant 0 : index
    %c0_0 = arith.constant 0 : index
    %0 = vector.load %arg2[%c0, %c0_0] : memref<8x32xf32, #tpu.memory_space<vmem>>, vector<8x32xf32>
    %cst = arith.constant dense<0.000000e+00> : vector<8xf32>
    %1 = vector.multi_reduction <add>, %0, %cst [1] : vector<8x32xf32> to vector<8xf32>
    %2 = vector.shape_cast %1 : vector<8xf32> to vector<8x1xf32>
    %cst_1 = arith.constant 3.200000e+01 : f32
    %3 = vector.broadcast %cst_1 : f32 to vector<8x1xf32>
    %4 = arith.divf %2, %3 : vector<8x1xf32>
    %5 = vector.broadcast %4 : vector<8x1xf32> to vector<8x32xf32>
    %6 = arith.subf %0, %5 : vector<8x32xf32>
    %7 = arith.mulf %6, %6 : vector<8x32xf32>
    %cst_2 = arith.constant dense<0.000000e+00> : vector<8xf32>
    %8 = vector.multi_reduction <add>, %7, %cst_2 [1] : vector<8x32xf32> to vector<8xf32>
    %9 = vector.shape_cast %8 : vector<8xf32> to vector<8x1xf32>
    %cst_3 = arith.constant 0.0322580636 : f32
    %10 = vector.broadcast %cst_3 : f32 to vector<8x1xf32>
    %11 = arith.mulf %9, %10 : vector<8x1xf32>
    %12 = math.sqrt %11 : vector<8x1xf32>
    %cst_4 = arith.constant 9.99999997E-7 : f32
    %13 = vector.broadcast %cst_4 : f32 to vector<8x1xf32>
    %14 = arith.addf %12, %13 : vector<8x1xf32>
    %cst_5 = arith.constant 1.000000e+00 : f32
    %15 = vector.broadcast %cst_5 : f32 to vector<8x1xf32>
    %16 = arith.divf %15, %14 : vector<8x1xf32>
    %c0_6 = arith.constant 0 : index
    %c0_7 = arith.constant 0 : index
    %17 = vector.load %arg5[%c0_6, %c0_7] : memref<1x32xf32, #tpu.memory_space<vmem>>, vector<1x32xf32>
    %18 = vector.broadcast %16 : vector<8x1xf32> to vector<8x32xf32>
    %19 = arith.mulf %6, %18 : vector<8x32xf32>
    %20 = vector.broadcast %17 : vector<1x32xf32> to vector<8x32xf32>
    %21 = arith.mulf %20, %19 : vector<8x32xf32>
    %c0_8 = arith.constant 0 : index
    %c0_9 = arith.constant 0 : index
    %22 = vector.load %arg6[%c0_8, %c0_9] : memref<1x32xf32, #tpu.memory_space<vmem>>, vector<1x32xf32>
    %23 = vector.broadcast %22 : vector<1x32xf32> to vector<8x32xf32>
    %24 = arith.addf %21, %23 : vector<8x32xf32>
    %25 = arith.truncf %24 : vector<8x32xf32> to vector<8x32xbf16>
    %c0_10 = arith.constant 0 : index
    %c0_11 = arith.constant 0 : index
    %26 = vector.load %arg3[%c0_10, %c0_11] : memref<32x32xbf16, #tpu.memory_space<vmem>>, vector<32x32xbf16>
    %cst_12 = arith.constant dense<0.000000e+00> : vector<8x32xf32>
    %27 = tpu.matmul %25, %26, %cst_12 {dimension_numbers = #tpu.dot_dimension_numbers<[1], [0], [0], [1], [0, 0, 1, 1], [], []>} : vector<8x32xbf16>, vector<32x32xbf16>, vector<8x32xf32> -> vector<8x32xf32>
    %c0_13 = arith.constant 0 : index
    %c0_14 = arith.constant 0 : index
    %28 = vector.load %arg4[%c0_13, %c0_14] : memref<1x32xf32, #tpu.memory_space<vmem>>, vector<1x32xf32>
    %29 = vector.broadcast %28 : vector<1x32xf32> to vector<8x32xf32>
    %30 = arith.addf %27, %29 : vector<8x32xf32>
    %31 = arith.addf %0, %30 : vector<8x32xf32>
    %c0_15 = arith.constant 0 : index
    %c0_16 = arith.constant 0 : index
    %32 = vector.load %arg7[%c0_15, %c0_16] : memref<8x32xf32, #tpu.memory_space<vmem>>, vector<8x32xf32>
    tpu.vector_store %arg7[%c0_15, %c0_16], %31 {strides = array<i32>} : memref<8x32xf32, #tpu.memory_space<vmem>>, vector<8x32xf32>,
    return
  }
  func.func @transform_0(%arg0: i32, %arg1: memref<1xi32, #tpu.memory_space<smem>>) -> (i32, i32) {
    %c0_i32 = arith.constant 0 : i32
    %c0_i32_0 = arith.constant 0 : i32
    return %arg0, %c0_i32 : i32, i32
  }
  func.func @transform_1(%arg0: i32, %arg1: memref<1xi32, #tpu.memory_space<smem>>) -> (i32, i32) {
    %c0_i32 = arith.constant 0 : i32
    %c0_i32_0 = arith.constant 0 : i32
    %c0_i32_1 = arith.constant 0 : i32
    return %c0_i32, %c0_i32_0 : i32, i32
  }
  func.func @transform_2(%arg0: i32, %arg1: memref<1xi32, #tpu.memory_space<smem>>) -> (i32, i32) {
    %c0_i32 = arith.constant 0 : i32
    %c0_i32_0 = arith.constant 0 : i32
    %c0_i32_1 = arith.constant 0 : i32
    return %c0_i32, %c0_i32_0 : i32, i32
  }
  func.func @transform_3(%arg0: i32, %arg1: memref<1xi32, #tpu.memory_space<smem>>) -> (i32, i32) {
    %c0_i32 = arith.constant 0 : i32
    %c0_i32_0 = arith.constant 0 : i32
    %c0_i32_1 = arith.constant 0 : i32
    return %c0_i32, %c0_i32_0 : i32, i32
  }
  func.func @transform_4(%arg0: i32, %arg1: memref<1xi32, #tpu.memory_space<smem>>) -> (i32, i32) {
    %c0_i32 = arith.constant 0 : i32
    %c0_i32_0 = arith.constant 0 : i32
    %c0_i32_1 = arith.constant 0 : i32
    return %c0_i32, %c0_i32_0 : i32, i32
  }
  func.func @transform_5(%arg0: i32, %arg1: memref<1xi32, #tpu.memory_space<smem>>) -> (i32, i32) {
    %c0_i32 = arith.constant 0 : i32
    %c0_i32_0 = arith.constant 0 : i32
    return %arg0, %c0_i32 : i32, i32
  }
}

</mosaic_0001>

<llo_original>
// kernel: tpu_custom_call.1
$region0: #{tpu_custom_call.1}
  #allocation0 [shape = 'u32[]', space=smem, size = 0x4, offset = 0x4, fixed_abs, tag = 'smem constant byte address 0x4 - core index']
  #allocation1 [shape = 'u32[144,128]{1,0:T(1,128)}', space=vmem, size = 0x12000, scoped, tag = 'internal scratch']
  #allocation2 [shape = 's32[1]{0}', space=sflag, size = 0x4, scoped, tag = 'scoped memory for tpu_custom_call.1']
  #allocation3 [shape = 's32[1]{0:T(128)S(6)}', space=smem, size = 0x200, scoped, tag = 'prefetched SMEM operand 0']
  %s0 = inlined_call_operand.<no memory space> [shape: s32[1], index: 0, kind: input, shape index: {}]
  %s1 = inlined_call_operand.hbm [shape: f32[16,32], index: 1, kind: input, shape index: {}]
  %s2 = inlined_call_operand.hbm [shape: bf16[32,32], index: 2, kind: input, shape index: {}]
  %s3 = inlined_call_operand.vmem [shape: f32[1,32], index: 3, kind: input, shape index: {}]
  %s4 = inlined_call_operand.vmem [shape: f32[1,32], index: 4, kind: input, shape index: {}]
  %s5 = inlined_call_operand.vmem [shape: f32[1,32], index: 5, kind: input, shape index: {}]
  %s6 = inlined_call_operand.hbm [shape: f32[16,32], index: 6, kind: output, shape index: {}]
  %s7 = sld [smem:[#allocation0]]
  $region61: #{tpu_custom_call.1} parent=0
    _
  %s9 = ssub.s32 1, %s7
  %s10 = scalar_select 0, %s9, %s7
  %11 = sst [smem:[#allocation3]] %s0
  $region1: #{tpu_custom_call.1} parent=0
    #allocation4 [shape = 'u8[8192]{0}', space=vmem, size = 0x2000, scoped, tag = 'input window, operand 1']
    #allocation5 [shape = 's32[2]{0}', space=sflag, size = 0x8, scoped, tag = 'scoped memory for tpu_custom_call.1']
    #allocation6 [shape = 's32[2]{0}', space=sflag, size = 0x8, scoped, tag = 'scoped memory for tpu_custom_call.1']
    #allocation7 [shape = 'u8[8192]{0}', space=vmem, size = 0x2000, scoped, tag = 'input window, operand 2, single buffered']
    #allocation8 [shape = 's32[1]{0}', space=sflag, size = 0x4, scoped, tag = 'scoped memory for tpu_custom_call.1']
    #allocation9 [shape = 'u8[8192]{0}', space=vmem, size = 0x2000, scoped, tag = 'output window, operand 0']
    %12 = vsyncpa [#allocation5], 0
    %s13 = scalar_lea.sflag [#allocation5], 1
    %14 = vsyncpa %s13, 0
    %15 = vsyncpa [#allocation8], 0
    %16 = vsyncpa [#allocation6], 0
    %s17 = scalar_lea.sflag [#allocation6], 1
    %18 = vsyncpa %s17, 0
    loop: start=0, step=1, limit=4
    $region2: #{tpu_custom_call.1} parent=1 // loop_pre_header
      _
    $region3: #{tpu_custom_call.1} parent=1 // loop_header
      %s20 = sphi 0, %s24
      %p21 = scmp.ge.s32.totalorder %s20, 4
      %s30 = sphi 0, %s32
      %s33 = sphi 0, %s30
      %s34 = sphi 0, %s33
      %s50 = sphi 0, %s34
      %s54 = sphi 0, %s54
      %s56 = sphi 0, %s54
      %s57 = sphi 0, %s56
      %s71 = sphi 0, %s57
      %s75 = sphi 0, %s75
      %s77 = sphi 0, %s75
      %s78 = sphi 0, %s77
      %s92 = sphi 0, %s78
      %s96 = sphi 0, %s96
      %s98 = sphi 0, %s96
      %s99 = sphi 0, %s98
      %s113 = sphi 0, %s99
      %s117 = sphi 0, %s117
      %s119 = sphi 0, %s117
      %s120 = sphi 0, %s119
      %s134 = sphi 0, %s120
      %s140 = sphi 0, %s142
      %s143 = sphi 0, %s140
      %s144 = sphi 0, %s143
      %s160 = sphi 0, %s144
    $region4: #{tpu_custom_call.1} parent=1 // loop_header_branch
      %23 = sbr.rel (%p21) target = $region8
    $region5: #{tpu_custom_call.1} parent=1 // loop_body
      %s25 = ssub.s32 %s20, 1
      %s26 = ssub.s32 %s20, 2
      %s27 = sadd.s32 %s20, 1
      %s28 = ssub.s32 %s20, %s27
      %p29 = scmp.eq.s32.totalorder %s28, 0
      %s31 = sadd.s32 %s30, 1
      %s32 = scalar_select %p29, %s30, %s31
      %p35 = pneg %p29
      %p36 = scmp.eq.s32.totalorder %s20, 1
      %p37 = por %p35, %p36
      %p38 = scmp.ne.s32.totalorder %s30, %s33
      %p39 = scmp.eq.s32.totalorder %s20, 0
      %p40 = por %p38, %p39
      %p41 = scmp.ne.s32.totalorder %s30, %s33
      %p42 = scmp.eq.s32.totalorder %s25, 1
      %p43 = por %p41, %p42
      %p44 = scmp.ne.s32.totalorder %s33, %s34
      %p45 = scmp.eq.s32.totalorder %s25, 0
      %p46 = por %p44, %p45
      %p47 = scmp.ne.s32.totalorder %s33, %s34
      %p48 = scmp.eq.s32.totalorder %s26, 1
      %p49 = por %p47, %p48
      %p51 = scmp.ne.s32.totalorder %s34, %s50
      %p52 = scmp.eq.s32.totalorder %s26, 0
      %p53 = por %p51, %p52
      %s55 = sadd.s32 %s54, 1
      %p58 = scmp.eq.s32.totalorder %s20, 1
      %p59 = scmp.ne.s32.totalorder %s54, %s56
      %p60 = scmp.eq.s32.totalorder %s20, 0
      %p61 = por %p59, %p60
      %p62 = scmp.ne.s32.totalorder %s54, %s56
      %p63 = scmp.eq.s32.totalorder %s25, 1
      %p64 = por %p62, %p63
      %p65 = scmp.ne.s32.totalorder %s56, %s57
      %p66 = scmp.eq.s32.totalorder %s25, 0
      %p67 = por %p65, %p66
      %p68 = scmp.ne.s32.totalorder %s56, %s57
      %p69 = scmp.eq.s32.totalorder %s26, 1
      %p70 = por %p68, %p69
      %p72 = scmp.ne.s32.totalorder %s57, %s71
      %p73 = scmp.eq.s32.totalorder %s26, 0
      %p74 = por %p72, %p73
      %s76 = sadd.s32 %s75, 1
      %p79 = scmp.eq.s32.totalorder %s20, 1
      %p80 = scmp.ne.s32.totalorder %s75, %s77
      %p81 = scmp.eq.s32.totalorder %s20, 0
      %p82 = por %p80, %p81
      %p83 = scmp.ne.s32.totalorder %s75, %s77
      %p84 = scmp.eq.s32.totalorder %s25, 1
      %p85 = por %p83, %p84
      %p86 = scmp.ne.s32.totalorder %s77, %s78
      %p87 = scmp.eq.s32.totalorder %s25, 0
      %p88 = por %p86, %p87
      %p89 = scmp.ne.s32.totalorder %s77, %s78
      %p90 = scmp.eq.s32.totalorder %s26, 1
      %p91 = por %p89, %p90
      %p93 = scmp.ne.s32.totalorder %s78, %s92
      %p94 = scmp.eq.s32.totalorder %s26, 0
      %p95 = por %p93, %p94
      %s97 = sadd.s32 %s96, 1
      %p100 = scmp.eq.s32.totalorder %s20, 1
      %p101 = scmp.ne.s32.totalorder %s96, %s98
      %p102 = scmp.eq.s32.totalorder %s20, 0
      %p103 = por %p101, %p102
      %p104 = scmp.ne.s32.totalorder %s96, %s98
      %p105 = scmp.eq.s32.totalorder %s25, 1
      %p106 = por %p104, %p105
      %p107 = scmp.ne.s32.totalorder %s98, %s99
      %p108 = scmp.eq.s32.totalorder %s25, 0
      %p109 = por %p107, %p108
      %p110 = scmp.ne.s32.totalorder %s98, %s99
      %p111 = scmp.eq.s32.totalorder %s26, 1
      %p112 = por %p110, %p111
      %p114 = scmp.ne.s32.totalorder %s99, %s113
      %p115 = scmp.eq.s32.totalorder %s26, 0
      %p116 = por %p114, %p115
      %s118 = sadd.s32 %s117, 1
      %p121 = scmp.eq.s32.totalorder %s20, 1
      %p122 = scmp.ne.s32.totalorder %s117, %s119
      %p123 = scmp.eq.s32.totalorder %s20, 0
      %p124 = por %p122, %p123
      %p125 = scmp.ne.s32.totalorder %s117, %s119
      %p126 = scmp.eq.s32.totalorder %s25, 1
      %p127 = por %p125, %p126
      %p128 = scmp.ne.s32.totalorder %s119, %s120
      %p129 = scmp.eq.s32.totalorder %s25, 0
      %p130 = por %p128, %p129
      %p131 = scmp.ne.s32.totalorder %s119, %s120
      %p132 = scmp.eq.s32.totalorder %s26, 1
      %p133 = por %p131, %p132
      %p135 = scmp.ne.s32.totalorder %s120, %s134
      %p136 = scmp.eq.s32.totalorder %s26, 0
      %p137 = por %p135, %p136
      %s138 = ssub.s32 %s20, %s27
      %p139 = scmp.eq.s32.totalorder %s138, 0
      %s141 = sadd.s32 %s140, 1
      %s142 = scalar_select %p139, %s140, %s141
      %p145 = pneg %p139
      %p146 = scmp.eq.s32.totalorder %s20, 1
      %p147 = por %p145, %p146
      %p148 = scmp.ne.s32.totalorder %s140, %s143
      %p149 = scmp.eq.s32.totalorder %s20, 0
      %p150 = por %p148, %p149
      %p151 = scmp.ne.s32.totalorder %s140, %s143
      %p152 = scmp.eq.s32.totalorder %s25, 1
      %p153 = por %p151, %p152
      %p154 = scmp.ne.s32.totalorder %s143, %s144
      %p155 = scmp.eq.s32.totalorder %s25, 0
      %p156 = por %p154, %p155
      %p157 = scmp.ne.s32.totalorder %s143, %s144
      %p158 = scmp.eq.s32.totalorder %s26, 1
      %p159 = por %p157, %p158
      %p161 = scmp.ne.s32.totalorder %s144, %s160
      %p162 = scmp.eq.s32.totalorder %s26, 0
      %p163 = por %p161, %p162
      %p164 = scmp.le.s32.totalorder 1, %s20
      %p165 = scmp.lt.s32.totalorder %s20, 3
      %p166 = pnand %p164, %p165
      %p167 = pneg %p166
      // Predicated region
      $region9: #{tpu_custom_call.1} parent=5 // pred_check
        _
      $region10: #{tpu_custom_call.1} parent=5 // pred_check_branch
        %169 = sbr.rel (%p166) target = $region12
      $region11: #{tpu_custom_call.1} parent=5 // pred_region
        %s170 = ssub.s32 %s20, 1
        // Predicated region
        $region13: #{tpu_custom_call.1} parent=11 // pred_check
          %p171 = pneg %p67
        $region14: #{tpu_custom_call.1} parent=11 // pred_check_branch
          %173 = sbr.rel (%p171) target = $region16
        $region15: #{tpu_custom_call.1} parent=11 // pred_region
          %s175 = ssub.s32 256, 256
          %176 = vsyncadd [#allocation8], %s175
          %s177 = sshll.u32 [#allocation7], 4
          %s178 = int_to_ptr.vmem [resolvable:$true] %s177
          %183 = dma.hbm_to_vmem [thread:$0]  %s2, 256, %s178, [#allocation8], 64, 64, 4
        $region16: #{tpu_custom_call.1} parent=11 // pred_fallthru
          _
        // Predicated region
        $region17: #{tpu_custom_call.1} parent=11 // pred_check
          %p184 = pneg %p88
        $region18: #{tpu_custom_call.1} parent=11 // pred_check_branch
          %186 = sbr.rel (%p184) target = $region20
        $region19: #{tpu_custom_call.1} parent=11 // pred_region
          _
        $region20: #{tpu_custom_call.1} parent=11 // pred_fallthru
          _
        // Predicated region
        $region21: #{tpu_custom_call.1} parent=11 // pred_check
          %p187 = pneg %p109
        $region22: #{tpu_custom_call.1} parent=11 // pred_check_branch
          %189 = sbr.rel (%p187) target = $region24
        $region23: #{tpu_custom_call.1} parent=11 // pred_region
          _
        $region24: #{tpu_custom_call.1} parent=11 // pred_fallthru
          _
        // Predicated region
        $region25: #{tpu_custom_call.1} parent=11 // pred_check
          %p190 = pneg %p130
        $region26: #{tpu_custom_call.1} parent=11 // pred_check_branch
          %192 = sbr.rel (%p190) target = $region28
        $region27: #{tpu_custom_call.1} parent=11 // pred_region
          _
        $region28: #{tpu_custom_call.1} parent=11 // pred_fallthru
          _
      $region12: #{tpu_custom_call.1} parent=5 // pred_fallthru
        _
      %p193 = scmp.lt.s32.totalorder %s20, 2
      // Predicated region
      $region29: #{tpu_custom_call.1} parent=5 // pred_check
        %p194 = pneg %p193
      $region30: #{tpu_custom_call.1} parent=5 // pred_check_branch
        %196 = sbr.rel (%p194) target = $region32
      $region31: #{tpu_custom_call.1} parent=5 // pred_region
        // Predicated region
        $region33: #{tpu_custom_call.1} parent=31 // pred_check
          %p197 = pneg %p40
        $region34: #{tpu_custom_call.1} parent=31 // pred_check_branch
          %199 = sbr.rel (%p197) target = $region36
        $region35: #{tpu_custom_call.1} parent=31 // pred_region
          %s200 = sand.u32 %s30, 1
          %s201 = scalar_lea.sflag [#allocation5], %s200
          %s202 = sand.u32 %s30, 1
          %s203 = smul.addr %s202, 8
          %s204 = scalar_lea.vmem [#allocation4], %s203
          %s206 = ssub.s32 128, 128
          %207 = vsyncadd %s201, %s206
          %s208 = smul.addr %s20, 128
          %s209 = scalar_lea.hbm %s1, %s208
          %s211 = sshll.u32 %s204, 4
          %s212 = int_to_ptr.vmem [resolvable:$true] %s211
          %214 = dma.hbm_to_vmem [thread:$0]  %s209, 128, %s212, %s201
        $region36: #{tpu_custom_call.1} parent=31 // pred_fallthru
          _
      $region32: #{tpu_custom_call.1} parent=5 // pred_fallthru
        _
      %p215 = scmp.le.s32.totalorder 1, %s20
      %p216 = scmp.lt.s32.totalorder %s20, 3
      %p217 = pnand %p215, %p216
      %p218 = pneg %p217
      // Predicated region
      $region37: #{tpu_custom_call.1} parent=5 // pred_check
        _
      $region38: #{tpu_custom_call.1} parent=5 // pred_check_branch
        %220 = sbr.rel (%p217) target = $region40
      $region39: #{tpu_custom_call.1} parent=5 // pred_region
        %s221 = ssub.s32 %s20, 1
        %s222 = sand.u32 %s33, 1
        %s223 = scalar_lea.sflag [#allocation5], %s222
        %s224 = sand.u32 %s33, 1
        %s225 = smul.addr %s224, 8
        %s226 = scalar_lea.vmem [#allocation4], %s225
        // Predicated region
        $region41: #{tpu_custom_call.1} parent=39 // pred_check
          %p227 = pneg %p46
        $region42: #{tpu_custom_call.1} parent=39 // pred_check_branch
          %229 = sbr.rel (%p227) target = $region44
        $region43: #{tpu_custom_call.1} parent=39 // pred_region
          %230 = dma.done %s223, 128
        $region44: #{tpu_custom_call.1} parent=39 // pred_fallthru
          _
        // Predicated region
        $region45: #{tpu_custom_call.1} parent=39 // pred_check
          %p231 = pneg %p67
        $region46: #{tpu_custom_call.1} parent=39 // pred_check_branch
          %233 = sbr.rel (%p231) target = $region48
        $region47: #{tpu_custom_call.1} parent=39 // pred_region
          %234 = dma.done [#allocation8], 256
        $region48: #{tpu_custom_call.1} parent=39 // pred_fallthru
          _
        %s235 = sand.u32 %s33, 1
        %s236 = scalar_lea.sflag [#allocation5], %s235
        %s237 = sand.u32 %s33, 1
        %s238 = smul.addr %s237, 8
        %s239 = scalar_lea.vmem [#allocation4], %s238
        %p240 = pneg %p46
        %p241 = pneg %p43
        %p242 = pneg %p67
        %p243 = pneg %p64
        %p244 = pneg %p88
        %p245 = pneg %p85
        %p246 = pneg %p109
        %p247 = pneg %p106
        %p248 = pneg %p130
        %p249 = pneg %p127
        %p250 = pneg %p156
        %p251 = pneg %p153
        %s252 = sand.u32 %s143, 1
        %s253 = scalar_lea.sflag [#allocation6], %s252
        %s254 = sand.u32 %s143, 1
        %s255 = smul.addr %s254, 8
        %s256 = scalar_lea.vmem [#allocation9], %s255
        %v258 = vld [vmem:[%s226] sm:$0xff]
        %vm259 = vcmask 261120
        %v260 = vsel %vm259, %v258, 0.0
        %261 = vadd.xlane.f32.xlu0 %v260
        %v262 = vpop.xlane.xlu0 %261
        %v263 = vrcp.pop 32.0
        %v264 = vmul.f32 %v262, %v263
        %v265 = vsub.f32 %v258, %v264
        %v266 = vmul.f32 %v265, %v265
        %v267 = vsel %vm259, %v266, 0.0
        %268 = vadd.xlane.f32.xlu0 %v267
        %v269 = vpop.xlane.xlu0 %268
        %v270 = vmul.f32 %v269, 0.032258064
        %v271 = vrsqrt.pop %v270
        %v272 = vmul.f32 %v270, %v271
        %vm273 = vcmp.eq.f32.partialorder %v270, inf
        %v274 = vsel %vm273, %v270, %v272
        %vm275 = vcmp.eq.f32.partialorder %v270, 0.0
        %v276 = vand.u32 %v270, 2147483648
        %v277 = vsel %vm275, %v276, %v274
        %v278 = vadd.f32 %v277, 1e-06
        %v279 = vrcp.pop %v278
        %v280 = vmul.f32 1.0, %v279
        %v281 = vld [vmem:[%s4] sm:$0x1]
        %v282 = vmul.f32 %v265, %v280
        %v284 = vlaneseq
        %v285 = vshrl.u32 %v284, 7
        %v286 = vsub.s32 0, %v285
        %v287 = vrot.slane %v281, %v286
        %v289 = vmul.f32 %v287, %v282
        %v290 = vld [vmem:[%s5] sm:$0x1]
        %v292 = vlaneseq
        %v293 = vshrl.u32 %v292, 7
        %v294 = vsub.s32 0, %v293
        %v295 = vrot.slane %v290, %v294
        %v297 = vadd.f32 %v289, %v295
        %v298 = vpack.c.bf16 %v297, %v297
        %v299 = vld [vmem:[#allocation7] sm:$0xf]
        %v300 = vld [vmem:[#allocation7 + $0x4] sm:$0xf]
        %v301 = vld [vmem:[#allocation7 + $0x8] sm:$0xf]
        %v302 = vld [vmem:[#allocation7 + $0xc] sm:$0xf]
        %v303 = vld [vmem:[%s3] sm:$0x1]
        %v305 = vlaneseq
        %v306 = vshrl.u32 %v305, 7
        %v307 = vsub.s32 0, %v306
        %v308 = vrot.slane %v303, %v307
        %v314 = vunpack.c.l.b16 %v299
        %v315 = vunpack.c.l.b16 %v300
        %v316 = vunpack.c.l.b16 %v301
        %v317 = vunpack.c.l.b16 %v302
        %v318 = vpack.c.b16 %v315, %v314
        %v319 = vpack.c.b16 %v317, %v316
        %v323 = vsel %vm259, %v298, 0
        %325 = vmatprep.subr.bf16.mxu0 0
        %326 = vmatpush1.bf16.msra.mxu0 0
        %327 = vmatprep.subr.bf16.mxu0 0
        %328 = vmatpush1.bf16.msra.mxu0 0
        %329 = vmatprep.subr.bf16.mxu0 0
        %330 = vmatpush1.bf16.msra.mxu0 0
        %331 = vmatprep.subr.bf16.mxu0 0
        %332 = vmatpush1.bf16.msra.mxu0 0
        %333 = vmatprep.subr.bf16.mxu0 0
        %334 = vmatpush1.bf16.msra.mxu0 0
        %335 = vmatprep.subr.bf16.mxu0 0
        %336 = vmatpush1.bf16.msra.mxu0 0
        %337 = vmatprep.subr.bf16.mxu0 0
        %338 = vmatpush1.bf16.msra.mxu0 %v319
        %339 = vmatprep.subr.bf16.mxu0 0
        %340 = vmatpush1.bf16.msra.mxu0 %v318
        %341 = vmatprep.subr.bf16.mxu0 0
        %342 = vmatpush2.bf16.msra.mxu0 0
        %343 = vmatprep.subr.bf16.mxu0 0
        %344 = vmatpush2.bf16.msra.mxu0 0
        %345 = vmatprep.subr.bf16.mxu0 0
        %346 = vmatpush2.bf16.msra.mxu0 0
        %347 = vmatprep.subr.bf16.mxu0 0
        %348 = vmatpush2.bf16.msra.mxu0 0
        %349 = vmatprep.subr.bf16.mxu0 0
        %350 = vmatpush2.bf16.msra.mxu0 0
        %351 = vmatprep.subr.bf16.mxu0 0
        %352 = vmatpush2.bf16.msra.mxu0 0
        %353 = vmatprep.subr.bf16.mxu0 0
        %354 = vmatpush2.bf16.msra.mxu0 0
        %355 = vmatprep.subr.bf16.mxu0 0
        %356 = vmatpush2.bf16.msra.mxu0 0
        %357 = vmatprep.mubr.bf16.mxu0 0
        %358 = vmatmul.mubr.bf16.gmra.mxu0 %v323
        %v359 = vpop.f32.mrf.mxu0
        %v360 = vadd.f32 %v308, %v359
        %v361 = vpop.f32.mrf.mxu0
        %v362 = vpop.f32.mrf.mxu0
        %v363 = vpop.f32.mrf.mxu0
        %364 = vdwg.mxu0
        %v365 = vadd.f32 %v258, %v360
        %366 = vst.msk [vmem:[%s256] sm:$0xff] %vm259, %v365
        %s367 = sand.u32 %s143, 1
        %s368 = scalar_lea.sflag [#allocation6], %s367
        %s369 = sand.u32 %s143, 1
        %s370 = smul.addr %s369, 8
        %s371 = scalar_lea.vmem [#allocation9], %s370
        // Predicated region
        $region49: #{tpu_custom_call.1} parent=39 // pred_check
          %p372 = pneg %p153
        $region50: #{tpu_custom_call.1} parent=39 // pred_check_branch
          %374 = sbr.rel (%p372) target = $region52
        $region51: #{tpu_custom_call.1} parent=39 // pred_region
          %s376 = ssub.s32 128, 128
          %377 = vsyncadd %s368, %s376
          %s378 = smul.addr %s25, 128
          %s379 = scalar_lea.hbm %s6, %s378
          %s381 = sshll.u32 %s371, 4
          %s382 = int_to_ptr.vmem [resolvable:$true] %s381
          %384 = dma.vmem_to_hbm [thread:$0]  %s382, 128, %s379, %s368
        $region52: #{tpu_custom_call.1} parent=39 // pred_fallthru
          _
      $region40: #{tpu_custom_call.1} parent=5 // pred_fallthru
        _
      %p385 = scmp.le.s32.totalorder 2, %s20
      // Predicated region
      $region53: #{tpu_custom_call.1} parent=5 // pred_check
        %p386 = pneg %p385
      $region54: #{tpu_custom_call.1} parent=5 // pred_check_branch
        %388 = sbr.rel (%p386) target = $region56
      $region55: #{tpu_custom_call.1} parent=5 // pred_region
        %s389 = ssub.s32 %s20, 2
        // Predicated region
        $region57: #{tpu_custom_call.1} parent=55 // pred_check
          %p390 = pneg %p159
        $region58: #{tpu_custom_call.1} parent=55 // pred_check_branch
          %392 = sbr.rel (%p390) target = $region60
        $region59: #{tpu_custom_call.1} parent=55 // pred_region
          %s393 = sand.u32 %s144, 1
          %s394 = scalar_lea.sflag [#allocation6], %s393
          %s395 = sand.u32 %s144, 1
          %s396 = smul.addr %s395, 8
          %s397 = scalar_lea.vmem [#allocation9], %s396
          %398 = dma.done %s394, 128
        $region60: #{tpu_custom_call.1} parent=55 // pred_fallthru
          _
      $region56: #{tpu_custom_call.1} parent=5 // pred_fallthru
        _
    $region6: #{tpu_custom_call.1} parent=1 // loop_footer
      %s24 = sadd.s32 1, %s20
    $region7: #{tpu_custom_call.1} parent=1 // loop_footer_branch
      %19 = sbr.rel target = $region3
    $region8: #{tpu_custom_call.1} parent=1 // loop_exit
      _
    %399 = vsyncpa [#allocation5], 1
    %s400 = scalar_lea.sflag [#allocation5], 1
    %401 = vsyncpa %s400, 1
    %402 = vsyncpa [#allocation8], 1
    %403 = vsyncpa [#allocation6], 1
    %s404 = scalar_lea.sflag [#allocation6], 1
    %405 = vsyncpa %s404, 1

</llo_original>
